<compile_context>
chip_gen: v6e
topology: v6e:2x2x1
jax: 0.10.0
libtpu: 0.0.40
codegen_flags: <defaults>
</compile_context>

<pallas_src>
import functools

import jax
import jax.numpy as jnp
from jax.experimental import pallas as pl
from jax.experimental.pallas import tpu as pltpu

LANE = 128


def _round_up(x, m):
    return ((x + m - 1) // m) * m


def classification_kernel(x_ref, we_ref, be_ref, wf_ref, bf_ref, alpha_ref,
                          out_ref, *, n_classes):
    # x_ref:     (B, D)         f32   flattened input (VMEM resident)
    # we_ref:    (D, E_pad)     bf16  embedding weight (zero-padded, resident)
    # be_ref:    (1, E_pad)     f32   embedding bias (zero-padded)
    # wf_ref:    (E_pad, C_pad) bf16  fc1 weight (zero-padded)
    # bf_ref:    (1, C_pad)     f32   fc1 bias (zero-padded)
    # alpha_ref: (1,)           f32   PReLU slope, SMEM scalar
    # out_ref:   (B, C_pad)     f32   log-softmax scores; padded lanes ~= -1e30

    # embedding_net: flatten + Linear (f32 activations; bf16 weights upcast in VMEM)
    emb = jnp.dot(x_ref[...], we_ref[...].astype(jnp.float32),
                  preferred_element_type=jnp.float32) + be_ref[...]

    # PReLU with a single shared alpha (nn.PReLU() default)
    alpha = alpha_ref[0]
    h = jnp.where(emb > 0, emb, alpha * emb)

    # fc1
    logits = jnp.dot(h, wf_ref[...].astype(jnp.float32),
                     preferred_element_type=jnp.float32) + bf_ref[...]

    # Mask padded class lanes with a large finite negative: contributes ~0 to the
    # sum-exp, but the padded output buffer never holds -inf (contract: padded lanes
    # are "very negative log-probs", wrapper slices them off).
    col = jax.lax.broadcasted_iota(jnp.int32, logits.shape, 1)
    logits = jnp.where(col < n_classes, logits, jnp.float32(-1e30))

    # Numerically stable log_softmax along the last axis (exp/log on the EUP slot).
    m = jnp.max(logits, axis=-1, keepdims=True)
    z = logits - m
    lse = jnp.log(jnp.sum(jnp.exp(z), axis=-1, keepdims=True))
    out_ref[...] = (z - lse).astype(out_ref.dtype)


def prepare_params(params):
    """One-time preprocessing: pad weights to lane-dense shapes and cast to bf16.

    Done once (outside the forward path) so no per-call pad/cast HBM traffic remains.
    """
    w_emb = params["w_emb"]
    b_emb = params["b_emb"]
    alpha = params["alpha"]
    w_fc = params["w_fc"]
    b_fc = params["b_fc"]

    D, E = w_emb.shape
    C = w_fc.shape[1]
    E_pad = _round_up(E, LANE)
    C_pad = _round_up(C, LANE)

    we_p = jnp.zeros((D, E_pad), jnp.bfloat16).at[:, :E].set(w_emb.astype(jnp.bfloat16))
    be_p = jnp.zeros((1, E_pad), jnp.float32).at[:, :E].set(
        b_emb.reshape(1, -1).astype(jnp.float32))
    wf_p = jnp.zeros((E_pad, C_pad), jnp.bfloat16).at[:E, :C].set(w_fc.astype(jnp.bfloat16))
    bf_p = jnp.zeros((1, C_pad), jnp.float32).at[:, :C].set(
        b_fc.reshape(1, -1).astype(jnp.float32))
    alpha_p = alpha.reshape(-1).astype(jnp.float32)   # (1,) scalar -> SMEM

    return {"we": we_p, "be": be_p, "wf": wf_p, "bf": bf_p, "alpha": alpha_p,
            "in_features": D, "n_classes": C}


def classification_net_forward(x_nchw, prepared):
    """x_nchw: (B, C, H, W) float32. Returns (B, n_classes) log-probs (float32)."""
    B = x_nchw.shape[0]
    x_flat = x_nchw.reshape(B, -1).astype(jnp.float32)
    D = x_flat.shape[1]
    assert D == prepared["in_features"]

    we, be, wf, bf, alpha = (prepared["we"], prepared["be"], prepared["wf"],
                             prepared["bf"], prepared["alpha"])
    C = prepared["n_classes"]
    E_pad = we.shape[1]
    C_pad = wf.shape[1]

    operand_bytes = (x_flat.size * 4 + we.size * 2 + be.size * 4
                     + wf.size * 2 + bf.size * 4 + B * C_pad * 4)
    # Derived VMEM budget: double-buffered operands + f32 weight upcast / epilogue
    # temporaries + headroom (a few MiB total, not a blanket 32 MiB).
    vmem_limit = int(2 * operand_bytes + we.size * 4 + (4 << 20))

    cost = pl.CostEstimate(
        flops=2 * B * D * E_pad + 2 * B * E_pad * C_pad,
        transcendentals=B * C_pad,
        bytes_accessed=int(operand_bytes),
    )

    vmem = pltpu.MemorySpace.VMEM
    out_padded = pl.pallas_call(
        functools.partial(classification_kernel, n_classes=C),
        out_shape=jax.ShapeDtypeStruct((B, C_pad), jnp.float32),
        in_specs=[
            pl.BlockSpec(memory_space=vmem),                    # x (f32, resident)
            pl.BlockSpec(memory_space=vmem),                    # w_emb (bf16, resident)
            pl.BlockSpec(memory_space=vmem),                    # b_emb
            pl.BlockSpec(memory_space=vmem),                    # w_fc (bf16, resident)
            pl.BlockSpec(memory_space=vmem),                    # b_fc
            pl.BlockSpec(memory_space=pltpu.MemorySpace.SMEM),  # alpha: SMEM scalar
        ],
        out_specs=pl.BlockSpec(memory_space=vmem),
        compiler_params=pltpu.CompilerParams(vmem_limit_bytes=vmem_limit),
        cost_estimate=cost,
    )(x_flat, we, be, wf, bf, alpha)

    # TODO(synk): with B=2 there is no independent work for the second v7x TensorCore;
    # if B grows (>=16), add a leading "parallel" batch grid axis (do not split K).
    return out_padded[:, :C]


def init_params(key, in_features, embedding_dim, n_classes):
    k1, k2, k3, k4 = jax.random.split(key, 4)
    w_emb = (jax.random.normal(k1, (in_features, embedding_dim), jnp.float32)
             / jnp.sqrt(in_features))
    b_emb = jax.random.normal(k2, (1, embedding_dim), jnp.float32) * 0.01
    alpha = jnp.full((1,), 0.25, jnp.float32)  # nn.PReLU() default init
    w_fc = (jax.random.normal(k3, (embedding_dim, n_classes), jnp.float32)
            / jnp.sqrt(embedding_dim))
    b_fc = jax.random.normal(k4, (1, n_classes), jnp.float32) * 0.01
    return {"w_emb": w_emb, "b_emb": b_emb, "alpha": alpha,
            "w_fc": w_fc, "b_fc": b_fc}


if __name__ == "__main__":
    # Small shapes consistent with the module's forward (NCHW input flattened by the
    # synthesized embedding net). D = 4*16*16 = 1024 (lane-aligned, no padding needed).
    B, Cin, H, W = 2, 4, 16, 16
    embedding_dim = 32
    n_classes = 10
    D = Cin * H * W

    key = jax.random.PRNGKey(0)
    kx, kp = jax.random.split(key)
    x = jax.random.normal(kx, (B, Cin, H, W), jnp.float32)
    params = init_params(kp, D, embedding_dim, n_classes)

    # One-time parameter preprocessing (padding + bf16 cast), outside the forward path.
    prepared = prepare_params(params)

    scores = classification_net_forward(x, prepared)
    scores = jax.block_until_ready(scores)

    # Pure-JAX f32 reference (kernel stores bf16 weights -> modest tolerance;
    # activations stay f32 in the kernel).
    x_flat = x.reshape(B, -1)
    emb = x_flat @ params["w_emb"] + params["b_emb"]
    h = jnp.where(emb > 0, emb, params["alpha"][0] * emb)
    logits = h @ params["w_fc"] + params["b_fc"]
    ref = jax.nn.log_softmax(logits, axis=-1)

    row_sums = jnp.sum(jnp.exp(scores), axis=-1)
    assert scores.shape == (B, n_classes)
    assert bool(jnp.all(jnp.abs(row_sums - 1.0) < 1e-4))
    assert bool(jnp.allclose(scores, ref, atol=5e-2)), float(jnp.max(jnp.abs(scores - ref)))

    print("KERNEL_OK")
</pallas_src>

<mosaic_0001>
module attributes {stable_mosaic.version = 11 : i64} {
  func.func @classification_kernel(%arg0: memref<2x1024xf32, #tpu.memory_space<vmem>>, %arg1: memref<1024x128xbf16, #tpu.memory_space<vmem>>, %arg2: memref<1x128xf32, #tpu.memory_space<vmem>>, %arg3: memref<128x128xbf16, #tpu.memory_space<vmem>>, %arg4: memref<1x128xf32, #tpu.memory_space<vmem>>, %arg5: memref<1xf32, #tpu.memory_space<smem>>, %arg6: memref<2x128xf32, #tpu.memory_space<vmem>>) attributes {dimension_semantics = [], scalar_prefetch = 0 : i64, scratch_operands = 0 : i64, tpu.core_type = #tpu.core_type<tc>} {
    %c0 = arith.constant 0 : index
    %c0_0 = arith.constant 0 : index
    %0 = vector.load %arg0[%c0, %c0_0] : memref<2x1024xf32, #tpu.memory_space<vmem>>, vector<2x1024xf32>
    %c0_1 = arith.constant 0 : index
    %c0_2 = arith.constant 0 : index
    %1 = vector.load %arg1[%c0_1, %c0_2] : memref<1024x128xbf16, #tpu.memory_space<vmem>>, vector<1024x128xbf16>
    %2 = arith.extf %1 : vector<1024x128xbf16> to vector<1024x128xf32>
    %cst = arith.constant dense<0.000000e+00> : vector<2x128xf32>
    %3 = tpu.matmul %0, %2, %cst {dimension_numbers = #tpu.dot_dimension_numbers<[1], [0], [0], [1], [0, 0, 1, 1], [], []>} : vector<2x1024xf32>, vector<1024x128xf32>, vector<2x128xf32> -> vector<2x128xf32>
    %c0_3 = arith.constant 0 : index
    %c0_4 = arith.constant 0 : index
    %4 = vector.load %arg2[%c0_3, %c0_4] : memref<1x128xf32, #tpu.memory_space<vmem>>, vector<1x128xf32>
    %5 = vector.broadcast %4 : vector<1x128xf32> to vector<2x128xf32>
    %6 = arith.addf %3, %5 : vector<2x128xf32>
    %c0_5 = arith.constant 0 : index
    %7 = memref.load %arg5[%c0_5] : memref<1xf32, #tpu.memory_space<smem>>
    %cst_6 = arith.constant 0.000000e+00 : f32
    %8 = vector.broadcast %cst_6 : f32 to vector<2x128xf32>
    %9 = arith.cmpf ogt, %6, %8 : vector<2x128xf32>
    %10 = vector.broadcast %7 : f32 to vector<2x128xf32>
    %11 = arith.mulf %10, %6 : vector<2x128xf32>
    %12 = arith.select %9, %6, %11 : vector<2x128xi1>, vector<2x128xf32>
    %c0_7 = arith.constant 0 : index
    %c0_8 = arith.constant 0 : index
    %13 = vector.load %arg3[%c0_7, %c0_8] : memref<128x128xbf16, #tpu.memory_space<vmem>>, vector<128x128xbf16>
    %14 = arith.extf %13 : vector<128x128xbf16> to vector<128x128xf32>
    %cst_9 = arith.constant dense<0.000000e+00> : vector<2x128xf32>
    %15 = tpu.matmul %12, %14, %cst_9 {dimension_numbers = #tpu.dot_dimension_numbers<[1], [0], [0], [1], [0, 0, 1, 1], [], []>} : vector<2x128xf32>, vector<128x128xf32>, vector<2x128xf32> -> vector<2x128xf32>
    %c0_10 = arith.constant 0 : index
    %c0_11 = arith.constant 0 : index
    %16 = vector.load %arg4[%c0_10, %c0_11] : memref<1x128xf32, #tpu.memory_space<vmem>>, vector<1x128xf32>
    %17 = vector.broadcast %16 : vector<1x128xf32> to vector<2x128xf32>
    %18 = arith.addf %15, %17 : vector<2x128xf32>
    %19 = tpu.iota {dimensions = array<i32: 1>} : vector<2x128xi32>
    %c10_i32 = arith.constant 10 : i32
    %20 = vector.broadcast %c10_i32 : i32 to vector<2x128xi32>
    %21 = arith.cmpi slt, %19, %20 : vector<2x128xi32>
    %cst_12 = arith.constant -1.000000e+30 : f32
    %22 = vector.broadcast %cst_12 : f32 to vector<2x128xf32>
    %23 = arith.select %21, %18, %22 : vector<2x128xi1>, vector<2x128xf32>
    %cst_13 = arith.constant dense<0xFF800000> : vector<2xf32>
    %24 = vector.multi_reduction <maximumf>, %23, %cst_13 [1] : vector<2x128xf32> to vector<2xf32>
    %25 = vector.shape_cast %24 : vector<2xf32> to vector<2x1xf32>
    %26 = vector.broadcast %25 : vector<2x1xf32> to vector<2x128xf32>
    %27 = arith.subf %23, %26 : vector<2x128xf32>
    %28 = math.exp %27 : vector<2x128xf32>
    %cst_14 = arith.constant dense<0.000000e+00> : vector<2xf32>
    %29 = vector.multi_reduction <add>, %28, %cst_14 [1] : vector<2x128xf32> to vector<2xf32>
    %30 = vector.shape_cast %29 : vector<2xf32> to vector<2x1xf32>
    %31 = math.log %30 : vector<2x1xf32>
    %32 = vector.broadcast %31 : vector<2x1xf32> to vector<2x128xf32>
    %33 = arith.subf %27, %32 : vector<2x128xf32>
    %c0_15 = arith.constant 0 : index
    %c0_16 = arith.constant 0 : index
    %34 = vector.load %arg6[%c0_15, %c0_16] : memref<2x128xf32, #tpu.memory_space<vmem>>, vector<2x128xf32>
    tpu.vector_store %arg6[%c0_15, %c0_16], %33 {strides = array<i32>} : memref<2x128xf32, #tpu.memory_space<vmem>>, vector<2x128xf32>,
    return
  }
}

</mosaic_0001>

<llo_original>
// kernel: tpu_custom_call.1
$region0: #{tpu_custom_call.1}
  #allocation0 [shape = 'u32[]', space=smem, size = 0x4, offset = 0x4, fixed_abs, tag = 'smem constant byte address 0x4 - core index']
  #allocation1 [shape = 'u32[144,128]{1,0:T(1,128)}', space=vmem, size = 0x12000, scoped, tag = 'internal scratch']
  #allocation2 [shape = 'f32[1]{0:T(128)S(6)}', space=smem, size = 0x200, scoped, tag = 'scoped memory for tpu_custom_call.1']
  %s0 = inlined_call_operand.hbm [shape: f32[2,1024], index: 0, kind: input, shape index: {}]
  %s1 = inlined_call_operand.hbm [shape: bf16[1024,128], index: 1, kind: input, shape index: {}]
  %s2 = inlined_call_operand.vmem [shape: f32[1,128], index: 2, kind: input, shape index: {}]
  %s3 = inlined_call_operand.hbm [shape: bf16[128,128], index: 3, kind: input, shape index: {}]
  %s4 = inlined_call_operand.vmem [shape: f32[1,128], index: 4, kind: input, shape index: {}]
  %s5 = inlined_call_operand.<no memory space> [shape: f32[1], index: 5, kind: input, shape index: {}]
  %s6 = inlined_call_operand.hbm [shape: f32[2,128], index: 6, kind: output, shape index: {}]
  %s7 = sld [smem:[#allocation0]]
  $region46: #{tpu_custom_call.1} parent=0
    _
  %s9 = ssub.s32 1, %s7
  %s10 = scalar_select 0, %s9, %s7
  %11 = sst [smem:[#allocation2]] %s5
  $region1: #{tpu_custom_call.1} parent=0
    #allocation3 [shape = 'u8[8192]{0}', space=vmem, size = 0x2000, scoped, tag = 'input window, operand 0, single buffered']
    #allocation4 [shape = 's32[1]{0}', space=sflag, size = 0x4, scoped, tag = 'scoped memory for tpu_custom_call.1']
    #allocation5 [shape = 's32[1]{0}', space=sflag, size = 0x4, scoped, tag = 'scoped memory for tpu_custom_call.1']
    #allocation6 [shape = 'u8[262144]{0}', space=vmem, size = 0x40000, scoped, tag = 'input window, operand 1, single buffered']
    #allocation7 [shape = 's32[1]{0}', space=sflag, size = 0x4, scoped, tag = 'scoped memory for tpu_custom_call.1']
    #allocation8 [shape = 'u8[32768]{0}', space=vmem, size = 0x8000, scoped, tag = 'input window, operand 3, single buffered']
    #allocation9 [shape = 'u8[1024]{0}', space=vmem, size = 0x400, scoped, tag = 'output window, operand 0, single buffered']
    %12 = vsyncpa [#allocation4], 0
    %13 = vsyncpa [#allocation7], 0
    %14 = vsyncpa [#allocation5], 0
    // Predicated region
    $region2: #{tpu_custom_call.1} parent=1 // pred_check
      _
    $region3: #{tpu_custom_call.1} parent=1 // pred_check_branch
      %16 = sbr.rel (0) target = $region5
    $region4: #{tpu_custom_call.1} parent=1 // pred_region
      %s18 = ssub.s32 256, 256
      %19 = vsyncadd [#allocation4], %s18
      %s21 = sshll.u32 [#allocation3], 4
      %s22 = int_to_ptr.vmem [resolvable:$true] %s21
      %24 = dma.hbm_to_vmem [thread:$0]  %s0, 256, %s22, [#allocation4]
    $region5: #{tpu_custom_call.1} parent=1 // pred_fallthru
      _
    // Predicated region
    $region6: #{tpu_custom_call.1} parent=1 // pred_check
      _
    $region7: #{tpu_custom_call.1} parent=1 // pred_check_branch
      %26 = sbr.rel (0) target = $region9
    $region8: #{tpu_custom_call.1} parent=1 // pred_region
      %s28 = ssub.s32 8192, 8192
      %29 = vsyncadd [#allocation7], %s28
      %s30 = sshll.u32 [#allocation6], 4
      %s31 = int_to_ptr.vmem [resolvable:$true] %s30
      %36 = dma.hbm_to_vmem [thread:$0]  %s1, 8192, %s31, [#allocation7], 64, 64, 4
    $region9: #{tpu_custom_call.1} parent=1 // pred_fallthru
      _
    // Predicated region
    $region10: #{tpu_custom_call.1} parent=1 // pred_check
      _
    $region11: #{tpu_custom_call.1} parent=1 // pred_check_branch
      %38 = sbr.rel (0) target = $region13
    $region12: #{tpu_custom_call.1} parent=1 // pred_region
      _
    $region13: #{tpu_custom_call.1} parent=1 // pred_fallthru
      _
    // Predicated region
    $region14: #{tpu_custom_call.1} parent=1 // pred_check
      _
    $region15: #{tpu_custom_call.1} parent=1 // pred_check_branch
      %40 = sbr.rel (0) target = $region17
    $region16: #{tpu_custom_call.1} parent=1 // pred_region
      %s42 = ssub.s32 1024, 1024
      %43 = vsyncadd [#allocation7], %s42
      %s44 = sshll.u32 [#allocation8], 4
      %s45 = int_to_ptr.vmem [resolvable:$true] %s44
      %50 = dma.hbm_to_vmem [thread:$0]  %s3, 1024, %s45, [#allocation7], 64, 64, 4
    $region17: #{tpu_custom_call.1} parent=1 // pred_fallthru
      _
    // Predicated region
    $region18: #{tpu_custom_call.1} parent=1 // pred_check
      _
    $region19: #{tpu_custom_call.1} parent=1 // pred_check_branch
      %52 = sbr.rel (0) target = $region21
    $region20: #{tpu_custom_call.1} parent=1 // pred_region
      _
    $region21: #{tpu_custom_call.1} parent=1 // pred_fallthru
      _
    // Predicated region
    $region22: #{tpu_custom_call.1} parent=1 // pred_check
      _
    $region23: #{tpu_custom_call.1} parent=1 // pred_check_branch
      %54 = sbr.rel (0) target = $region25
    $region24: #{tpu_custom_call.1} parent=1 // pred_region
      _
    $region25: #{tpu_custom_call.1} parent=1 // pred_fallthru
      _
    // Predicated region
    $region26: #{tpu_custom_call.1} parent=1 // pred_check
      _
    $region27: #{tpu_custom_call.1} parent=1 // pred_check_branch
      %56 = sbr.rel (0) target = $region29
    $region28: #{tpu_custom_call.1} parent=1 // pred_region
      %57 = dma.done [#allocation4], 256
    $region29: #{tpu_custom_call.1} parent=1 // pred_fallthru
      _
    // Predicated region
    $region30: #{tpu_custom_call.1} parent=1 // pred_check
      _
    $region31: #{tpu_custom_call.1} parent=1 // pred_check_branch
      %59 = sbr.rel (0) target = $region33
    $region32: #{tpu_custom_call.1} parent=1 // pred_region
      %60 = dma.done [#allocation7], 8192
    $region33: #{tpu_custom_call.1} parent=1 // pred_fallthru
      _
    // Predicated region
    $region34: #{tpu_custom_call.1} parent=1 // pred_check
      _
    $region35: #{tpu_custom_call.1} parent=1 // pred_check_branch
      %62 = sbr.rel (0) target = $region37
    $region36: #{tpu_custom_call.1} parent=1 // pred_region
      %63 = dma.done [#allocation7], 1024
    $region37: #{tpu_custom_call.1} parent=1 // pred_fallthru
      _
    %v64 = vld [vmem:[#allocation3] sm:$0xff]
    %v65 = vld [vmem:[#allocation3 + $0x8] sm:$0xff]
    %v66 = vld [vmem:[#allocation6] sm:$0xf]
    %v67 = vld [vmem:[#allocation6 + $0x4] sm:$0xf]
    %v68 = vld [vmem:[#allocation6 + $0x8] sm:$0xf]
    %v69 = vld [vmem:[#allocation6 + $0xc] sm:$0xf]
    %v70 = vld [vmem:[#allocation6 + $0x10] sm:$0xf]
    %v71 = vld [vmem:[#allocation6 + $0x14] sm:$0xf]
    %v72 = vld [vmem:[#allocation6 + $0x18] sm:$0xf]
    %v73 = vld [vmem:[#allocation6 + $0x1c] sm:$0xf]
    %v74 = vld [vmem:[#allocation6 + $0x20] sm:$0xf]
    %v75 = vld [vmem:[#allocation6 + $0x24] sm:$0xf]
    %v76 = vld [vmem:[#allocation6 + $0x28] sm:$0xf]
    %v77 = vld [vmem:[#allocation6 + $0x2c] sm:$0xf]
    %v78 = vld [vmem:[#allocation6 + $0x30] sm:$0xf]
    %v79 = vld [vmem:[#allocation6 + $0x34] sm:$0xf]
    %v80 = vld [vmem:[#allocation6 + $0x38] sm:$0xf]
    %v81 = vld [vmem:[#allocation6 + $0x3c] sm:$0xf]
    %v82 = vld [vmem:[#allocation6 + $0x40] sm:$0xf]
    %v83 = vld [vmem:[#allocation6 + $0x44] sm:$0xf]
    %v84 = vld [vmem:[#allocation6 + $0x48] sm:$0xf]
    %v85 = vld [vmem:[#allocation6 + $0x4c] sm:$0xf]
    %v86 = vld [vmem:[#allocation6 + $0x50] sm:$0xf]
    %v87 = vld [vmem:[#allocation6 + $0x54] sm:$0xf]
    %v88 = vld [vmem:[#allocation6 + $0x58] sm:$0xf]
    %v89 = vld [vmem:[#allocation6 + $0x5c] sm:$0xf]
    %v90 = vld [vmem:[#allocation6 + $0x60] sm:$0xf]
    %v91 = vld [vmem:[#allocation6 + $0x64] sm:$0xf]
    %v92 = vld [vmem:[#allocation6 + $0x68] sm:$0xf]
    %v93 = vld [vmem:[#allocation6 + $0x6c] sm:$0xf]
    %v94 = vld [vmem:[#allocation6 + $0x70] sm:$0xf]
    %v95 = vld [vmem:[#allocation6 + $0x74] sm:$0xf]
    %v96 = vld [vmem:[#allocation6 + $0x78] sm:$0xf]
    %v97 = vld [vmem:[#allocation6 + $0x7c] sm:$0xf]
    %v98 = vld [vmem:[#allocation6 + $0x80] sm:$0xf]
    %v99 = vld [vmem:[#allocation6 + $0x84] sm:$0xf]
    %v100 = vld [vmem:[#allocation6 + $0x88] sm:$0xf]
    %v101 = vld [vmem:[#allocation6 + $0x8c] sm:$0xf]
    %v102 = vld [vmem:[#allocation6 + $0x90] sm:$0xf]
    %v103 = vld [vmem:[#allocation6 + $0x94] sm:$0xf]
    %v104 = vld [vmem:[#allocation6 + $0x98] sm:$0xf]
    %v105 = vld [vmem:[#allocation6 + $0x9c] sm:$0xf]
    %v106 = vld [vmem:[#allocation6 + $0xa0] sm:$0xf]
    %v107 = vld [vmem:[#allocation6 + $0xa4] sm:$0xf]
    %v108 = vld [vmem:[#allocation6 + $0xa8] sm:$0xf]
    %v109 = vld [vmem:[#allocation6 + $0xac] sm:$0xf]
    %v110 = vld [vmem:[#allocation6 + $0xb0] sm:$0xf]
    %v111 = vld [vmem:[#allocation6 + $0xb4] sm:$0xf]
    %v112 = vld [vmem:[#allocation6 + $0xb8] sm:$0xf]
    %v113 = vld [vmem:[#allocation6 + $0xbc] sm:$0xf]
    %v114 = vld [vmem:[#allocation6 + $0xc0] sm:$0xf]
    %v115 = vld [vmem:[#allocation6 + $0xc4] sm:$0xf]
    %v116 = vld [vmem:[#allocation6 + $0xc8] sm:$0xf]
    %v117 = vld [vmem:[#allocation6 + $0xcc] sm:$0xf]
    %v118 = vld [vmem:[#allocation6 + $0xd0] sm:$0xf]
    %v119 = vld [vmem:[#allocation6 + $0xd4] sm:$0xf]
    %v120 = vld [vmem:[#allocation6 + $0xd8] sm:$0xf]
    %v121 = vld [vmem:[#allocation6 + $0xdc] sm:$0xf]
    %v122 = vld [vmem:[#allocation6 + $0xe0] sm:$0xf]
    %v123 = vld [vmem:[#allocation6 + $0xe4] sm:$0xf]
    %v124 = vld [vmem:[#allocation6 + $0xe8] sm:$0xf]
    %v125 = vld [vmem:[#allocation6 + $0xec] sm:$0xf]
    %v126 = vld [vmem:[#allocation6 + $0xf0] sm:$0xf]
    %v127 = vld [vmem:[#allocation6 + $0xf4] sm:$0xf]
    %v128 = vld [vmem:[#allocation6 + $0xf8] sm:$0xf]
    %v129 = vld [vmem:[#allocation6 + $0xfc] sm:$0xf]
    %v130 = vld [vmem:[#allocation6 + $0x100] sm:$0xf]
    %v131 = vld [vmem:[#allocation6 + $0x104] sm:$0xf]
    %v132 = vld [vmem:[#allocation6 + $0x108] sm:$0xf]
    %v133 = vld [vmem:[#allocation6 + $0x10c] sm:$0xf]
    %v134 = vld [vmem:[#allocation6 + $0x110] sm:$0xf]
    %v135 = vld [vmem:[#allocation6 + $0x114] sm:$0xf]
    %v136 = vld [vmem:[#allocation6 + $0x118] sm:$0xf]
    %v137 = vld [vmem:[#allocation6 + $0x11c] sm:$0xf]
    %v138 = vld [vmem:[#allocation6 + $0x120] sm:$0xf]
    %v139 = vld [vmem:[#allocation6 + $0x124] sm:$0xf]
    %v140 = vld [vmem:[#allocation6 + $0x128] sm:$0xf]
    %v141 = vld [vmem:[#allocation6 + $0x12c] sm:$0xf]
    %v142 = vld [vmem:[#allocation6 + $0x130] sm:$0xf]
    %v143 = vld [vmem:[#allocation6 + $0x134] sm:$0xf]
    %v144 = vld [vmem:[#allocation6 + $0x138] sm:$0xf]
    %v145 = vld [vmem:[#allocation6 + $0x13c] sm:$0xf]
    %v146 = vld [vmem:[#allocation6 + $0x140] sm:$0xf]
    %v147 = vld [vmem:[#allocation6 + $0x144] sm:$0xf]
    %v148 = vld [vmem:[#allocation6 + $0x148] sm:$0xf]
    %v149 = vld [vmem:[#allocation6 + $0x14c] sm:$0xf]
    %v150 = vld [vmem:[#allocation6 + $0x150] sm:$0xf]
    %v151 = vld [vmem:[#allocation6 + $0x154] sm:$0xf]
    %v152 = vld [vmem:[#allocation6 + $0x158] sm:$0xf]
    %v153 = vld [vmem:[#allocation6 + $0x15c] sm:$0xf]
    %v154 = vld [vmem:[#allocation6 + $0x160] sm:$0xf]
    %v155 = vld [vmem:[#allocation6 + $0x164] sm:$0xf]
    %v156 = vld [vmem:[#allocation6 + $0x168] sm:$0xf]
    %v157 = vld [vmem:[#allocation6 + $0x16c] sm:$0xf]
    %v158 = vld [vmem:[#allocation6 + $0x170] sm:$0xf]
    %v159 = vld [vmem:[#allocation6 + $0x174] sm:$0xf]
    %v160 = vld [vmem:[#allocation6 + $0x178] sm:$0xf]
    %v161 = vld [vmem:[#allocation6 + $0x17c] sm:$0xf]
    %v162 = vld [vmem:[#allocation6 + $0x180] sm:$0xf]
    %v163 = vld [vmem:[#allocation6 + $0x184] sm:$0xf]
    %v164 = vld [vmem:[#allocation6 + $0x188] sm:$0xf]
    %v165 = vld [vmem:[#allocation6 + $0x18c] sm:$0xf]
    %v166 = vld [vmem:[#allocation6 + $0x190] sm:$0xf]
    %v167 = vld [vmem:[#allocation6 + $0x194] sm:$0xf]
    %v168 = vld [vmem:[#allocation6 + $0x198] sm:$0xf]
    %v169 = vld [vmem:[#allocation6 + $0x19c] sm:$0xf]
    %v170 = vld [vmem:[#allocation6 + $0x1a0] sm:$0xf]
    %v171 = vld [vmem:[#allocation6 + $0x1a4] sm:$0xf]
    %v172 = vld [vmem:[#allocation6 + $0x1a8] sm:$0xf]
    %v173 = vld [vmem:[#allocation6 + $0x1ac] sm:$0xf]
    %v174 = vld [vmem:[#allocation6 + $0x1b0] sm:$0xf]
    %v175 = vld [vmem:[#allocation6 + $0x1b4] sm:$0xf]
    %v176 = vld [vmem:[#allocation6 + $0x1b8] sm:$0xf]
    %v177 = vld [vmem:[#allocation6 + $0x1bc] sm:$0xf]
    %v178 = vld [vmem:[#allocation6 + $0x1c0] sm:$0xf]
    %v179 = vld [vmem:[#allocation6 + $0x1c4] sm:$0xf]
    %v180 = vld [vmem:[#allocation6 + $0x1c8] sm:$0xf]
    %v181 = vld [vmem:[#allocation6 + $0x1cc] sm:$0xf]
    %v182 = vld [vmem:[#allocation6 + $0x1d0] sm:$0xf]
    %v183 = vld [vmem:[#allocation6 + $0x1d4] sm:$0xf]
    %v184 = vld [vmem:[#allocation6 + $0x1d8] sm:$0xf]
    %v185 = vld [vmem:[#allocation6 + $0x1dc] sm:$0xf]
    %v186 = vld [vmem:[#allocation6 + $0x1e0] sm:$0xf]
    %v187 = vld [vmem:[#allocation6 + $0x1e4] sm:$0xf]
    %v188 = vld [vmem:[#allocation6 + $0x1e8] sm:$0xf]
    %v189 = vld [vmem:[#allocation6 + $0x1ec] sm:$0xf]
    %v190 = vld [vmem:[#allocation6 + $0x1f0] sm:$0xf]
    %v191 = vld [vmem:[#allocation6 + $0x1f4] sm:$0xf]
    %v192 = vld [vmem:[#allocation6 + $0x1f8] sm:$0xf]
    %v193 = vld [vmem:[#allocation6 + $0x1fc] sm:$0xf]
    %v194 = vunpack.c.l.bf16 %v66
    %v195 = vunpack.c.l.bf16 %v67
    %v196 = vunpack.c.l.bf16 %v68
    %v197 = vunpack.c.l.bf16 %v69
    %v198 = vunpack.c.l.bf16 %v70
    %v199 = vunpack.c.l.bf16 %v71
    %v200 = vunpack.c.l.bf16 %v72
    %v201 = vunpack.c.l.bf16 %v73
    %v202 = vunpack.c.l.bf16 %v74
    %v203 = vunpack.c.l.bf16 %v75
    %v204 = vunpack.c.l.bf16 %v76
    %v205 = vunpack.c.l.bf16 %v77
    %v206 = vunpack.c.l.bf16 %v78
    %v207 = vunpack.c.l.bf16 %v79
    %v208 = vunpack.c.l.bf16 %v80
    %v209 = vunpack.c.l.bf16 %v81
    %v210 = vunpack.c.l.bf16 %v82
    %v211 = vunpack.c.l.bf16 %v83
    %v212 = vunpack.c.l.bf16 %v84
    %v213 = vunpack.c.l.bf16 %v85
    %v214 = vunpack.c.l.bf16 %v86
    %v215 = vunpack.c.l.bf16 %v87
    %v216 = vunpack.c.l.bf16 %v88
    %v217 = vunpack.c.l.bf16 %v89
    %v218 = vunpack.c.l.bf16 %v90
    %v219 = vunpack.c.l.bf16 %v91
    %v220 = vunpack.c.l.bf16 %v92
    %v221 = vunpack.c.l.bf16 %v93
    %v222 = vunpack.c.l.bf16 %v94
    %v223 = vunpack.c.l.bf16 %v95
    %v224 = vunpack.c.l.bf16 %v96
    %v225 = vunpack.c.l.bf16 %v97
    %v226 = vunpack.c.l.bf16 %v98
    %v227 = vunpack.c.l.bf16 %v99
    %v228 = vunpack.c.l.bf16 %v100
    %v229 = vunpack.c.l.bf16 %v101
    %v230 = vunpack.c.l.bf16 %v102
    %v231 = vunpack.c.l.bf16 %v103
    %v232 = vunpack.c.l.bf16 %v104
    %v233 = vunpack.c.l.bf16 %v105
    %v234 = vunpack.c.l.bf16 %v106
    %v235 = vunpack.c.l.bf16 %v107
    %v236 = vunpack.c.l.bf16 %v108
    %v237 = vunpack.c.l.bf16 %v109
    %v238 = vunpack.c.l.bf16 %v110
    %v239 = vunpack.c.l.bf16 %v111
    %v240 = vunpack.c.l.bf16 %v112
    %v241 = vunpack.c.l.bf16 %v113
    %v242 = vunpack.c.l.bf16 %v114
    %v243 = vunpack.c.l.bf16 %v115
    %v244 = vunpack.c.l.bf16 %v116
    %v245 = vunpack.c.l.bf16 %v117
    %v246 = vunpack.c.l.bf16 %v118
    %v247 = vunpack.c.l.bf16 %v119
    %v248 = vunpack.c.l.bf16 %v120
    %v249 = vunpack.c.l.bf16 %v121
    %v250 = vunpack.c.l.bf16 %v122
    %v251 = vunpack.c.l.bf16 %v123
    %v252 = vunpack.c.l.bf16 %v124
    %v253 = vunpack.c.l.bf16 %v125
    %v254 = vunpack.c.l.bf16 %v126
    %v255 = vunpack.c.l.bf16 %v127
    %v256 = vunpack.c.l.bf16 %v128
    %v257 = vunpack.c.l.bf16 %v129
    %v258 = vunpack.c.l.bf16 %v130
    %v259 = vunpack.c.l.bf16 %v131
    %v260 = vunpack.c.l.bf16 %v132
    %v261 = vunpack.c.l.bf16 %v133
    %v262 = vunpack.c.l.bf16 %v134
    %v263 = vunpack.c.l.bf16 %v135
    %v264 = vunpack.c.l.bf16 %v136
    %v265 = vunpack.c.l.bf16 %v137
    %v266 = vunpack.c.l.bf16 %v138
    %v267 = vunpack.c.l.bf16 %v139
    %v268 = vunpack.c.l.bf16 %v140
    %v269 = vunpack.c.l.bf16 %v141
    %v270 = vunpack.c.l.bf16 %v142
    %v271 = vunpack.c.l.bf16 %v143
    %v272 = vunpack.c.l.bf16 %v144
    %v273 = vunpack.c.l.bf16 %v145
    %v274 = vunpack.c.l.bf16 %v146
    %v275 = vunpack.c.l.bf16 %v147
    %v276 = vunpack.c.l.bf16 %v148
    %v277 = vunpack.c.l.bf16 %v149
    %v278 = vunpack.c.l.bf16 %v150
    %v279 = vunpack.c.l.bf16 %v151
    %v280 = vunpack.c.l.bf16 %v152
    %v281 = vunpack.c.l.bf16 %v153
    %v282 = vunpack.c.l.bf16 %v154
    %v283 = vunpack.c.l.bf16 %v155
    %v284 = vunpack.c.l.bf16 %v156
    %v285 = vunpack.c.l.bf16 %v157
    %v286 = vunpack.c.l.bf16 %v158
    %v287 = vunpack.c.l.bf16 %v159
    %v288 = vunpack.c.l.bf16 %v160
    %v289 = vunpack.c.l.bf16 %v161
    %v290 = vunpack.c.l.bf16 %v162
    %v291 = vunpack.c.l.bf16 %v163
    %v292 = vunpack.c.l.bf16 %v164
    %v293 = vunpack.c.l.bf16 %v165
    %v294 = vunpack.c.l.bf16 %v166
    %v295 = vunpack.c.l.bf16 %v167
    %v296 = vunpack.c.l.bf16 %v168
    %v297 = vunpack.c.l.bf16 %v169
    %v298 = vunpack.c.l.bf16 %v170
    %v299 = vunpack.c.l.bf16 %v171
    %v300 = vunpack.c.l.bf16 %v172
    %v301 = vunpack.c.l.bf16 %v173
    %v302 = vunpack.c.l.bf16 %v174
    %v303 = vunpack.c.l.bf16 %v175
    %v304 = vunpack.c.l.bf16 %v176
    %v305 = vunpack.c.l.bf16 %v177
    %v306 = vunpack.c.l.bf16 %v178
    %v307 = vunpack.c.l.bf16 %v179
    %v308 = vunpack.c.l.bf16 %v180
    %v309 = vunpack.c.l.bf16 %v181
    %v310 = vunpack.c.l.bf16 %v182
    %v311 = vunpack.c.l.bf16 %v183
    %v312 = vunpack.c.l.bf16 %v184
    %v313 = vunpack.c.l.bf16 %v185
    %v314 = vunpack.c.l.bf16 %v186
    %v315 = vunpack.c.l.bf16 %v187
    %v316 = vunpack.c.l.bf16 %v188
    %v317 = vunpack.c.l.bf16 %v189
    %v318 = vunpack.c.l.bf16 %v190
    %v319 = vunpack.c.l.bf16 %v191
    %v320 = vunpack.c.l.bf16 %v192
    %v321 = vunpack.c.l.bf16 %v193
    %v322 = vld [vmem:[%s2] sm:$0x1]
    %v324 = vlaneseq
    %v325 = vshrl.u32 %v324, 7
    %v326 = vsub.s32 0, %v325
    %v327 = vrot.slane %v322, %v326
    %v331 = vcombine.high %v64, %v64
    %v333 = vunpack.c.l.s4 1983009808
    %v334 = vunpack.c.0.s8 %v333
    %v335 = vlaneseq
    %v336 = vshrl.u32 %v335, 7
    %v337 = vsub.s32 %v334, %v336
    %v338 = vrot.slane %v64, %v337
    %v340 = vunpack.c.l.s4 1983009808
    %v341 = vunpack.c.0.s8 %v340
    %v342 = vlaneseq
    %v343 = vshrl.u32 %v342, 7
    %v344 = vsub.s32 %v341, %v343
    %v345 = vrot.slane %v331, %v344
    %v346 = vcombine.high %v338, %v338
    %v347 = vcombine.high %v345, %v345
    %v348 = vcombine.high %v65, %v65
    %v350 = vunpack.c.l.s4 1983009808
    %v351 = vunpack.c.0.s8 %v350
    %v352 = vlaneseq
    %v353 = vshrl.u32 %v352, 7
    %v354 = vsub.s32 %v351, %v353
    %v355 = vrot.slane %v65, %v354
    %v357 = vunpack.c.l.s4 1983009808
    %v358 = vunpack.c.0.s8 %v357
    %v359 = vlaneseq
    %v360 = vshrl.u32 %v359, 7
    %v361 = vsub.s32 %v358, %v360
    %v362 = vrot.slane %v348, %v361
    %v363 = vcombine.high %v355, %v355
    %v364 = vcombine.high %v362, %v362
    %373 = vmatprep.subr.mxu0 0.0
    %374 = vmatpush1.msra.mxu0 %v209
    %375 = vmatprep.subr.mxu0 0.0
    %376 = vmatpush1.msra.mxu0 %v208
    %377 = vmatprep.subr.mxu0 0.0
    %378 = vmatpush1.msra.mxu0 %v207
    %379 = vmatprep.subr.mxu0 0.0
    %380 = vmatpush1.msra.mxu0 %v206
    %381 = vmatprep.subr.mxu0 0.0
    %382 = vmatpush1.msra.mxu0 %v205
    %383 = vmatprep.subr.mxu0 0.0
    %384 = vmatpush1.msra.mxu0 %v204
    %385 = vmatprep.subr.mxu0 0.0
    %386 = vmatpush1.msra.mxu0 %v203
    %387 = vmatprep.subr.mxu0 0.0
    %388 = vmatpush1.msra.mxu0 %v202
    %389 = vmatprep.subr.mxu0 0.0
    %390 = vmatpush1.msra.mxu0 %v201
    %391 = vmatprep.subr.mxu0 0.0
    %392 = vmatpush1.msra.mxu0 %v200
    %393 = vmatprep.subr.mxu0 0.0
    %394 = vmatpush1.msra.mxu0 %v199
    %395 = vmatprep.subr.mxu0 0.0
    %396 = vmatpush1.msra.mxu0 %v198
    %397 = vmatprep.subr.mxu0 0.0
    %398 = vmatpush1.msra.mxu0 %v197
    %399 = vmatprep.subr.mxu0 0.0
    %400 = vmatpush1.msra.mxu0 %v196
    %401 = vmatprep.subr.mxu0 0.0
    %402 = vmatpush1.msra.mxu0 %v195
    %403 = vmatprep.subr.mxu0 0.0
    %404 = vmatpush1.msra.mxu0 %v194
    %405 = vmatprep.subr.mxu0 0.0
    %406 = vmatpush2.msra.mxu0 %v225
    %407 = vmatprep.subr.mxu0 0.0
    %408 = vmatpush2.msra.mxu0 %v224
    %409 = vmatprep.subr.mxu0 0.0
    %410 = vmatpush2.msra.mxu0 %v223
    %411 = vmatprep.subr.mxu0 0.0
    %412 = vmatpush2.msra.mxu0 %v222
    %413 = vmatprep.subr.mxu0 0.0
    %414 = vmatpush2.msra.mxu0 %v221
    %415 = vmatprep.subr.mxu0 0.0
    %416 = vmatpush2.msra.mxu0 %v220
    %417 = vmatprep.subr.mxu0 0.0
    %418 = vmatpush2.msra.mxu0 %v219
    %419 = vmatprep.subr.mxu0 0.0
    %420 = vmatpush2.msra.mxu0 %v218
    %421 = vmatprep.subr.mxu0 0.0
    %422 = vmatpush2.msra.mxu0 %v217
    %423 = vmatprep.subr.mxu0 0.0
    %424 = vmatpush2.msra.mxu0 %v216
    %425 = vmatprep.subr.mxu0 0.0
    %426 = vmatpush2.msra.mxu0 %v215
    %427 = vmatprep.subr.mxu0 0.0
    %428 = vmatpush2.msra.mxu0 %v214
    %429 = vmatprep.subr.mxu0 0.0
    %430 = vmatpush2.msra.mxu0 %v213
    %431 = vmatprep.subr.mxu0 0.0
    %432 = vmatpush2.msra.mxu0 %v212
    %433 = vmatprep.subr.mxu0 0.0
    %434 = vmatpush2.msra.mxu0 %v211
    %435 = vmatprep.subr.mxu0 0.0
    %436 = vmatpush2.msra.mxu0 %v210
    %437 = vmatprep.mubr.f32.mxu0 %v346
    %438 = vmatmul.mubr.f32.gmra.mxu0 %v338
    %v439 = vpop.f32.mrf.mxu0
    %v440 = vadd.f32 %v327, %v439
    %v441 = vpop.f32.mrf.mxu0
    %442 = vdwg.mxu0
    %443 = vmatprep.subr.mxu0 0.0
    %444 = vmatpush1.msra.mxu0 %v241
    %445 = vmatprep.subr.mxu0 0.0
    %446 = vmatpush1.msra.mxu0 %v240
    %447 = vmatprep.subr.mxu0 0.0
    %448 = vmatpush1.msra.mxu0 %v239
    %449 = vmatprep.subr.mxu0 0.0
    %450 = vmatpush1.msra.mxu0 %v238
    %451 = vmatprep.subr.mxu0 0.0
    %452 = vmatpush1.msra.mxu0 %v237
    %453 = vmatprep.subr.mxu0 0.0
    %454 = vmatpush1.msra.mxu0 %v236
    %455 = vmatprep.subr.mxu0 0.0
    %456 = vmatpush1.msra.mxu0 %v235
    %457 = vmatprep.subr.mxu0 0.0
    %458 = vmatpush1.msra.mxu0 %v234
    %459 = vmatprep.subr.mxu0 0.0
    %460 = vmatpush1.msra.mxu0 %v233
    %461 = vmatprep.subr.mxu0 0.0
    %462 = vmatpush1.msra.mxu0 %v232
    %463 = vmatprep.subr.mxu0 0.0
    %464 = vmatpush1.msra.mxu0 %v231
    %465 = vmatprep.subr.mxu0 0.0
    %466 = vmatpush1.msra.mxu0 %v230
    %467 = vmatprep.subr.mxu0 0.0
    %468 = vmatpush1.msra.mxu0 %v229
    %469 = vmatprep.subr.mxu0 0.0
    %470 = vmatpush1.msra.mxu0 %v228
    %471 = vmatprep.subr.mxu0 0.0
    %472 = vmatpush1.msra.mxu0 %v227
    %473 = vmatprep.subr.mxu0 0.0
    %474 = vmatpush1.msra.mxu0 %v226
    %475 = vmatprep.subr.mxu0 0.0
    %476 = vmatpush2.msra.mxu0 %v257
    %477 = vmatprep.subr.mxu0 0.0
    %478 = vmatpush2.msra.mxu0 %v256
    %479 = vmatprep.subr.mxu0 0.0
    %480 = vmatpush2.msra.mxu0 %v255
    %481 = vmatprep.subr.mxu0 0.0
    %482 = vmatpush2.msra.mxu0 %v254
    %483 = vmatprep.subr.mxu0 0.0
    %484 = vmatpush2.msra.mxu0 %v253
    %485 = vmatprep.subr.mxu0 0.0
    %486 = vmatpush2.msra.mxu0 %v252
    %487 = vmatprep.subr.mxu0 0.0
    %488 = vmatpush2.msra.mxu0 %v251
    %489 = vmatprep.subr.mxu0 0.0
    %490 = vmatpush2.msra.mxu0 %v250
    %491 = vmatprep.subr.mxu0 0.0
    %492 = vmatpush2.msra.mxu0 %v249
    %493 = vmatprep.subr.mxu0 0.0
    %494 = vmatpush2.msra.mxu0 %v248
    %495 = vmatprep.subr.mxu0 0.0
    %496 = vmatpush2.msra.mxu0 %v247
    %497 = vmatprep.subr.mxu0 0.0
    %498 = vmatpush2.msra.mxu0 %v246
    %499 = vmatprep.subr.mxu0 0.0
    %500 = vmatpush2.msra.mxu0 %v245
    %501 = vmatprep.subr.mxu0 0.0
    %502 = vmatpush2.msra.mxu0 %v244
    %503 = vmatprep.subr.mxu0 0.0
    %504 = vmatpush2.msra.mxu0 %v243
    %505 = vmatprep.subr.mxu0 0.0
    %506 = vmatpush2.msra.mxu0 %v242
    %507 = vmatprep.mubr.f32.mxu0 %v347
    %508 = vmatmul.mubr.f32.gmra.mxu0 %v345
    %v509 = vpop.f32.mrf.mxu0
    %v510 = vadd.f32 %v440, %v509
    %v511 = vpop.f32.mrf.mxu0
    %512 = vdwg.mxu0
    %513 = vmatprep.subr.mxu0 0.0
    %514 = vmatpush1.msra.mxu0 %v273
    %515 = vmatprep.subr.mxu0 0.0
    %516 = vmatpush1.msra.mxu0 %v272
    %517 = vmatprep.subr.mxu0 0.0
    %518 = vmatpush1.msra.mxu0 %v271
    %519 = vmatprep.subr.mxu0 0.0
    %520 = vmatpush1.msra.mxu0 %v270
    %521 = vmatprep.subr.mxu0 0.0
    %522 = vmatpush1.msra.mxu0 %v269
    %523 = vmatprep.subr.mxu0 0.0
    %524 = vmatpush1.msra.mxu0 %v268
    %525 = vmatprep.subr.mxu0 0.0
    %526 = vmatpush1.msra.mxu0 %v267
    %527 = vmatprep.subr.mxu0 0.0
    %528 = vmatpush1.msra.mxu0 %v266
    %529 = vmatprep.subr.mxu0 0.0
    %530 = vmatpush1.msra.mxu0 %v265
    %531 = vmatprep.subr.mxu0 0.0
    %532 = vmatpush1.msra.mxu0 %v264
    %533 = vmatprep.subr.mxu0 0.0
    %534 = vmatpush1.msra.mxu0 %v263
    %535 = vmatprep.subr.mxu0 0.0
    %536 = vmatpush1.msra.mxu0 %v262
    %537 = vmatprep.subr.mxu0 0.0
    %538 = vmatpush1.msra.mxu0 %v261
    %539 = vmatprep.subr.mxu0 0.0
    %540 = vmatpush1.msra.mxu0 %v260
    %541 = vmatprep.subr.mxu0 0.0
    %542 = vmatpush1.msra.mxu0 %v259
    %543 = vmatprep.subr.mxu0 0.0
    %544 = vmatpush1.msra.mxu0 %v258
    %545 = vmatprep.subr.mxu0 0.0
    %546 = vmatpush2.msra.mxu0 %v289
    %547 = vmatprep.subr.mxu0 0.0
    %548 = vmatpush2.msra.mxu0 %v288
    %549 = vmatprep.subr.mxu0 0.0
    %550 = vmatpush2.msra.mxu0 %v287
    %551 = vmatprep.subr.mxu0 0.0
    %552 = vmatpush2.msra.mxu0 %v286
    %553 = vmatprep.subr.mxu0 0.0
    %554 = vmatpush2.msra.mxu0 %v285
    %555 = vmatprep.subr.mxu0 0.0
    %556 = vmatpush2.msra.mxu0 %v284
    %557 = vmatprep.subr.mxu0 0.0
    %558 = vmatpush2.msra.mxu0 %v283
    %559 = vmatprep.subr.mxu0 0.0
    %560 = vmatpush2.msra.mxu0 %v282
    %561 = vmatprep.subr.mxu0 0.0
    %562 = vmatpush2.msra.mxu0 %v281
    %563 = vmatprep.subr.mxu0 0.0
    %564 = vmatpush2.msra.mxu0 %v280
    %565 = vmatprep.subr.mxu0 0.0
    %566 = vmatpush2.msra.mxu0 %v279
    %567 = vmatprep.subr.mxu0 0.0
    %568 = vmatpush2.msra.mxu0 %v278
    %569 = vmatprep.subr.mxu0 0.0
    %570 = vmatpush2.msra.mxu0 %v277
    %571 = vmatprep.subr.mxu0 0.0
    %572 = vmatpush2.msra.mxu0 %v276
    %573 = vmatprep.subr.mxu0 0.0
    %574 = vmatpush2.msra.mxu0 %v275
    %575 = vmatprep.subr.mxu0 0.0
    %576 = vmatpush2.msra.mxu0 %v274
    %577 = vmatprep.mubr.f32.mxu0 %v363
    %578 = vmatmul.mubr.f32.gmra.mxu0 %v355
    %v579 = vpop.f32.mrf.mxu0
    %v580 = vadd.f32 %v510, %v579
    %v581 = vpop.f32.mrf.mxu0
    %582 = vdwg.mxu0
    %583 = vmatprep.subr.mxu0 0.0
    %584 = vmatpush1.msra.mxu0 %v305
    %585 = vmatprep.subr.mxu0 0.0
    %586 = vmatpush1.msra.mxu0 %v304
    %587 = vmatprep.subr.mxu0 0.0
    %588 = vmatpush1.msra.mxu0 %v303
    %589 = vmatprep.subr.mxu0 0.0
    %590 = vmatpush1.msra.mxu0 %v302
    %591 = vmatprep.subr.mxu0 0.0
    %592 = vmatpush1.msra.mxu0 %v301
    %593 = vmatprep.subr.mxu0 0.0
    %594 = vmatpush1.msra.mxu0 %v300
    %595 = vmatprep.subr.mxu0 0.0
    %596 = vmatpush1.msra.mxu0 %v299
    %597 = vmatprep.subr.mxu0 0.0
    %598 = vmatpush1.msra.mxu0 %v298
    %599 = vmatprep.subr.mxu0 0.0
    %600 = vmatpush1.msra.mxu0 %v297
    %601 = vmatprep.subr.mxu0 0.0
    %602 = vmatpush1.msra.mxu0 %v296
    %603 = vmatprep.subr.mxu0 0.0
    %604 = vmatpush1.msra.mxu0 %v295
    %605 = vmatprep.subr.mxu0 0.0
    %606 = vmatpush1.msra.mxu0 %v294
    %607 = vmatprep.subr.mxu0 0.0
    %608 = vmatpush1.msra.mxu0 %v293
    %609 = vmatprep.subr.mxu0 0.0
    %610 = vmatpush1.msra.mxu0 %v292
    %611 = vmatprep.subr.mxu0 0.0
    %612 = vmatpush1.msra.mxu0 %v291
    %613 = vmatprep.subr.mxu0 0.0
    %614 = vmatpush1.msra.mxu0 %v290
    %615 = vmatprep.subr.mxu0 0.0
    %616 = vmatpush2.msra.mxu0 %v321
    %617 = vmatprep.subr.mxu0 0.0
    %618 = vmatpush2.msra.mxu0 %v320
    %619 = vmatprep.subr.mxu0 0.0
    %620 = vmatpush2.msra.mxu0 %v319
    %621 = vmatprep.subr.mxu0 0.0
    %622 = vmatpush2.msra.mxu0 %v318
    %623 = vmatprep.subr.mxu0 0.0
    %624 = vmatpush2.msra.mxu0 %v317
    %625 = vmatprep.subr.mxu0 0.0
    %626 = vmatpush2.msra.mxu0 %v316
    %627 = vmatprep.subr.mxu0 0.0
    %628 = vmatpush2.msra.mxu0 %v315
    %629 = vmatprep.subr.mxu0 0.0
    %630 = vmatpush2.msra.mxu0 %v314
    %631 = vmatprep.subr.mxu0 0.0
    %632 = vmatpush2.msra.mxu0 %v313
    %633 = vmatprep.subr.mxu0 0.0
    %634 = vmatpush2.msra.mxu0 %v312
    %635 = vmatprep.subr.mxu0 0.0
    %636 = vmatpush2.msra.mxu0 %v311
    %637 = vmatprep.subr.mxu0 0.0
    %638 = vmatpush2.msra.mxu0 %v310
    %639 = vmatprep.subr.mxu0 0.0
    %640 = vmatpush2.msra.mxu0 %v309
    %641 = vmatprep.subr.mxu0 0.0
    %642 = vmatpush2.msra.mxu0 %v308
    %643 = vmatprep.subr.mxu0 0.0
    %644 = vmatpush2.msra.mxu0 %v307
    %645 = vmatprep.subr.mxu0 0.0
    %646 = vmatpush2.msra.mxu0 %v306
    %647 = vmatprep.mubr.f32.mxu0 %v364
    %648 = vmatmul.mubr.f32.gmra.mxu0 %v362
    %v649 = vpop.f32.mrf.mxu0
    %v650 = vadd.f32 %v580, %v649
    %v651 = vpop.f32.mrf.mxu0
    %652 = vdwg.mxu0
    %s653 = sld [smem:[#allocation2]]
    %vm654 = vcmp.gt.f32.partialorder %v650, 0.0
    %v655 = vstv %s653
    %v656 = vmul.f32 %v655, %v650
    %v657 = vsel %vm654, %v650, %v656
    %v658 = vld [vmem:[#allocation8] sm:$0xf]
    %v659 = vld [vmem:[#allocation8 + $0x4] sm:$0xf]
    %v660 = vld [vmem:[#allocation8 + $0x8] sm:$0xf]
    %v661 = vld [vmem:[#allocation8 + $0xc] sm:$0xf]
    %v662 = vld [vmem:[#allocation8 + $0x10] sm:$0xf]
    %v663 = vld [vmem:[#allocation8 + $0x14] sm:$0xf]
    %v664 = vld [vmem:[#allocation8 + $0x18] sm:$0xf]
    %v665 = vld [vmem:[#allocation8 + $0x1c] sm:$0xf]
    %v666 = vld [vmem:[#allocation8 + $0x20] sm:$0xf]
    %v667 = vld [vmem:[#allocation8 + $0x24] sm:$0xf]
    %v668 = vld [vmem:[#allocation8 + $0x28] sm:$0xf]
    %v669 = vld [vmem:[#allocation8 + $0x2c] sm:$0xf]
    %v670 = vld [vmem:[#allocation8 + $0x30] sm:$0xf]
    %v671 = vld [vmem:[#allocation8 + $0x34] sm:$0xf]
    %v672 = vld [vmem:[#allocation8 + $0x38] sm:$0xf]
    %v673 = vld [vmem:[#allocation8 + $0x3c] sm:$0xf]
    %v674 = vunpack.c.l.bf16 %v658
    %v675 = vunpack.c.l.bf16 %v659
    %v676 = vunpack.c.l.bf16 %v660
    %v677 = vunpack.c.l.bf16 %v661
    %v678 = vunpack.c.l.bf16 %v662
    %v679 = vunpack.c.l.bf16 %v663
    %v680 = vunpack.c.l.bf16 %v664
    %v681 = vunpack.c.l.bf16 %v665
    %v682 = vunpack.c.l.bf16 %v666
    %v683 = vunpack.c.l.bf16 %v667
    %v684 = vunpack.c.l.bf16 %v668
    %v685 = vunpack.c.l.bf16 %v669
    %v686 = vunpack.c.l.bf16 %v670
    %v687 = vunpack.c.l.bf16 %v671
    %v688 = vunpack.c.l.bf16 %v672
    %v689 = vunpack.c.l.bf16 %v673
    %v690 = vld [vmem:[%s4] sm:$0x1]
    %v692 = vlaneseq
    %v693 = vshrl.u32 %v692, 7
    %v694 = vsub.s32 0, %v693
    %v695 = vrot.slane %v690, %v694
    %697 = vmatprep.subr.mxu0 0.0
    %698 = vmatpush1.msra.mxu0 %v689
    %699 = vmatprep.subr.mxu0 0.0
    %700 = vmatpush1.msra.mxu0 %v688
    %701 = vmatprep.subr.mxu0 0.0
    %702 = vmatpush1.msra.mxu0 %v687
    %703 = vmatprep.subr.mxu0 0.0
    %704 = vmatpush1.msra.mxu0 %v686
    %705 = vmatprep.subr.mxu0 0.0
    %706 = vmatpush1.msra.mxu0 %v685
    %707 = vmatprep.subr.mxu0 0.0
    %708 = vmatpush1.msra.mxu0 %v684
    %709 = vmatprep.subr.mxu0 0.0
    %710 = vmatpush1.msra.mxu0 %v683
    %711 = vmatprep.subr.mxu0 0.0
    %712 = vmatpush1.msra.mxu0 %v682
    %713 = vmatprep.subr.mxu0 0.0
    %714 = vmatpush1.msra.mxu0 %v681
    %715 = vmatprep.subr.mxu0 0.0
    %716 = vmatpush1.msra.mxu0 %v680
    %717 = vmatprep.subr.mxu0 0.0
    %718 = vmatpush1.msra.mxu0 %v679
    %719 = vmatprep.subr.mxu0 0.0
    %720 = vmatpush1.msra.mxu0 %v678
    %721 = vmatprep.subr.mxu0 0.0
    %722 = vmatpush1.msra.mxu0 %v677
    %723 = vmatprep.subr.mxu0 0.0
    %724 = vmatpush1.msra.mxu0 %v676
    %725 = vmatprep.subr.mxu0 0.0
    %726 = vmatpush1.msra.mxu0 %v675
    %727 = vmatprep.subr.mxu0 0.0
    %728 = vmatpush1.msra.mxu0 %v674
    %729 = vmatprep.subr.mxu0 0.0
    %730 = vmatpush2.msra.mxu0 0.0
    %731 = vmatprep.subr.mxu0 0.0
    %732 = vmatpush2.msra.mxu0 0.0
    %733 = vmatprep.subr.mxu0 0.0
    %734 = vmatpush2.msra.mxu0 0.0
    %735 = vmatprep.subr.mxu0 0.0
    %736 = vmatpush2.msra.mxu0 0.0
    %737 = vmatprep.subr.mxu0 0.0
    %738 = vmatpush2.msra.mxu0 0.0
    %739 = vmatprep.subr.mxu0 0.0
    %740 = vmatpush2.msra.mxu0 0.0
    %741 = vmatprep.subr.mxu0 0.0
    %742 = vmatpush2.msra.mxu0 0.0
    %743 = vmatprep.subr.mxu0 0.0
    %744 = vmatpush2.msra.mxu0 0.0
    %745 = vmatprep.subr.mxu0 0.0
    %746 = vmatpush2.msra.mxu0 0.0
    %747 = vmatprep.subr.mxu0 0.0
    %748 = vmatpush2.msra.mxu0 0.0
    %749 = vmatprep.subr.mxu0 0.0
    %750 = vmatpush2.msra.mxu0 0.0
    %751 = vmatprep.subr.mxu0 0.0
    %752 = vmatpush2.msra.mxu0 0.0
    %753 = vmatprep.subr.mxu0 0.0
    %754 = vmatpush2.msra.mxu0 0.0
    %755 = vmatprep.subr.mxu0 0.0
    %756 = vmatpush2.msra.mxu0 0.0
    %757 = vmatprep.subr.mxu0 0.0
    %758 = vmatpush2.msra.mxu0 0.0
    %759 = vmatprep.subr.mxu0 0.0
    %760 = vmatpush2.msra.mxu0 0.0
    %761 = vmatprep.mubr.f32.mxu0 0.0
    %762 = vmatmul.mubr.f32.gmra.mxu0 %v657
    %v763 = vpop.f32.mrf.mxu0
    %v764 = vadd.f32 %v695, %v763
    %v765 = vpop.f32.mrf.mxu0
    %766 = vdwg.mxu0
    %v767 = vlaneseq
    %v768 = vand.u32 %v767, 127
    %vm769 = vcmp.lt.s32.totalorder %v768, 10
    %v770 = vsel %vm769, %v764, -1e+30
    %vm771 = vcmask 1041408
    %v772 = vsel %vm771, %v770, -inf
    %773 = vmax.xlane.f32.xlu0 %v772
    %v774 = vpop.xlane.xlu0 %773
    %v775 = vsub.f32 %v770, %v774
    %v776 = vmul.f32 %v775, 1.442695
    %v777 = vpow.pop %v776
    %v778 = vsel %vm771, %v777, 0.0
    %779 = vadd.xlane.f32.xlu0 %v778
    %v780 = vpop.xlane.xlu0 %779
    %v781 = vlog2.pop %v780
    %v782 = vmul.f32 %v781, 0.6931472
    %v783 = vsub.f32 %v775, %v782
    %784 = vst [vmem:[#allocation9] sm:$0x3] %v783
    // Predicated region
    $region38: #{tpu_custom_call.1} parent=1 // pred_check
      _
    $region39: #{tpu_custom_call.1} parent=1 // pred_check_branch
      %786 = sbr.rel (0) target = $region41
    $region40: #{tpu_custom_call.1} parent=1 // pred_region
      %s788 = ssub.s32 32, 32
      %789 = vsyncadd [#allocation5], %s788
      %s791 = sshll.u32 [#allocation9], 4
      %s792 = int_to_ptr.vmem [resolvable:$true] %s791
      %794 = dma.vmem_to_hbm [thread:$0]  %s792, 32, %s6, [#allocation5]
    $region41: #{tpu_custom_call.1} parent=1 // pred_fallthru
      _
    // Predicated region
    $region42: #{tpu_custom_call.1} parent=1 // pred_check
      _
    $region43: #{tpu_custom_call.1} parent=1 // pred_check_branch
      %796 = sbr.rel (0) target = $region45
    $region44: #{tpu_custom_call.1} parent=1 // pred_region
      %797 = dma.done [#allocation5], 32
    $region45: #{tpu_custom_call.1} parent=1 // pred_fallthru
      _
    %798 = vsyncpa [#allocation4], 1
    %799 = vsyncpa [#allocation7], 1
    %800 = vsyncpa [#allocation5], 1

</llo_original>
